<compile_context>
chip_gen: v5e
topology: v5e:2x2
jax: 0.10.0
libtpu: 0.0.40
codegen_flags: <defaults>
</compile_context>

<pallas_src>
import jax
import jax.numpy as jnp
from jax.experimental import pallas as pl
from jax.experimental.pallas import tpu as pltpu


def _embed_dropout_kernel(label_ref, pos_ref, x_ref, mask_ref, out_ref):
    # Blocks per grid step:
    #   label_ref : (1, 1,   D)   broadcast over batch (resident, fetched once)
    #   pos_ref   : (1, S+1, D)   broadcast over batch (resident, fetched once)
    #   x_ref     : (TB, S,  D)   this batch tile's patch embeddings
    #   mask_ref  : (TB, S+1, D)  pre-scaled inverted-dropout multiplier (0 or 1/(1-p))
    #   out_ref   : (TB, S+1, D)
    lab_row = label_ref[0] + pos_ref[0, 0:1, :]            # (1, D)
    # Row 0: label token + its positional row, broadcast over the batch tile.
    out_ref[:, 0:1, :] = (lab_row[None, :, :] * mask_ref[:, 0:1, :]).astype(out_ref.dtype)
    # Rows 1..S: aligned elementwise add over the whole (TB, S, D) slab.
    patches = x_ref[...] + pos_ref[0, 1:, :][None, :, :]   # (TB, S, D)
    out_ref[:, 1:, :] = (patches * mask_ref[:, 1:, :]).astype(out_ref.dtype)


def _embed_kernel(label_ref, pos_ref, x_ref, out_ref):
    # Eval-mode (p == 0) variant: no mask input, no mask bandwidth.
    tb = out_ref.shape[0]
    lab_row = label_ref[0] + pos_ref[0, 0:1, :]            # (1, D)
    out_ref[:, 0:1, :] = jnp.broadcast_to(
        lab_row[None, :, :], (tb, 1, lab_row.shape[-1])).astype(out_ref.dtype)
    out_ref[:, 1:, :] = (x_ref[...] + pos_ref[0, 1:, :][None, :, :]).astype(out_ref.dtype)


def _pick_batch_block(B, S, D, itemsize, target_bytes=4 * 1024 * 1024):
    """Largest divisor of B whose per-step footprint (x + mask + out) stays near
    `target_bytes`.  Double-buffered this is still comfortably under the 32 MiB
    default scoped VMEM on every generation (64 MiB physical on v7x)."""
    bytes_per_batch = (S * D + 2 * (S + 1) * D) * itemsize
    tb = max(1, min(B, target_bytes // max(1, bytes_per_batch)))
    while B % tb:
        tb -= 1
    return tb


def image_embedding(x, label_token, position, *, dropout_rate=0.1, rng_key=None,
                    batch_block=None):
    """x: (B, num_patches, size) -> (B, num_patches + 1, size)."""
    B, S, D = x.shape
    S1 = S + 1
    assert label_token.shape == (1, 1, D)
    assert position.shape == (1, S1, D)
    assert 0.0 <= dropout_rate < 1.0

    TB = batch_block if batch_block is not None else _pick_batch_block(
        B, S, D, jnp.dtype(x.dtype).itemsize)
    grid = (B // TB,)

    # Broadcast-over-batch params: constant index_map -> fetched once, stay resident.
    label_spec = pl.BlockSpec((1, 1, D), lambda b: (0, 0, 0))
    pos_spec = pl.BlockSpec((1, S1, D), lambda b: (0, 0, 0))
    x_spec = pl.BlockSpec((TB, S, D), lambda b: (b, 0, 0))
    out_spec = pl.BlockSpec((TB, S1, D), lambda b: (b, 0, 0))
    out_shape = jax.ShapeDtypeStruct((B, S1, D), x.dtype)
    compiler_params = pltpu.CompilerParams(dimension_semantics=("parallel",))

    if dropout_rate > 0.0:
        if rng_key is None:
            rng_key = jax.random.PRNGKey(0)
        keep_prob = 1.0 - dropout_rate
        # Pre-scaled multiplicative mask: 0 where dropped, 1/(1-p) where kept.
        mask = (jax.random.bernoulli(rng_key, keep_prob, (B, S1, D)).astype(x.dtype)
                * jnp.asarray(1.0 / keep_prob, dtype=x.dtype))
        return pl.pallas_call(
            _embed_dropout_kernel,
            out_shape=out_shape,
            grid=grid,
            in_specs=[label_spec, pos_spec, x_spec,
                      pl.BlockSpec((TB, S1, D), lambda b: (b, 0, 0))],
            out_specs=out_spec,
            compiler_params=compiler_params,
        )(label_token, position, x, mask)

    return pl.pallas_call(
        _embed_kernel,
        out_shape=out_shape,
        grid=grid,
        in_specs=[label_spec, pos_spec, x_spec],
        out_specs=out_spec,
        compiler_params=compiler_params,
    )(label_token, position, x)


if __name__ == "__main__":
    # Small shapes consistent with the module: hidden size = 32, num_patches = 8, batch = 2.
    B, NUM_PATCHES, SIZE = 2, 8, 32
    P = 0.1

    key = jax.random.PRNGKey(0)
    k_x, k_pos, k_drop = jax.random.split(key, 3)

    # Deterministic parameter init mirroring __init__:
    #   label_token = zeros(1, 1, size); position = rand(1, num_patches+1, size) in [0, 1)
    label_token = jnp.zeros((1, 1, SIZE), dtype=jnp.float32)
    position = jax.random.uniform(k_pos, (1, NUM_PATCHES + 1, SIZE), dtype=jnp.float32)
    x = jax.random.normal(k_x, (B, NUM_PATCHES, SIZE), dtype=jnp.float32)

    # Pure-JAX reference of the deterministic part.
    ref = jnp.concatenate(
        [jnp.broadcast_to(label_token, (B, 1, SIZE)), x], axis=1) + position

    # Training-mode forward (dropout p=0.1).
    out = image_embedding(x, label_token, position, dropout_rate=P, rng_key=k_drop)
    out = jax.block_until_ready(out)
    assert out.shape == (B, NUM_PATCHES + 1, SIZE)
    # Reproduce the wrapper's mask to check the training path exactly.
    keep = jax.random.bernoulli(k_drop, 1.0 - P, (B, NUM_PATCHES + 1, SIZE))
    ref_train = jnp.where(keep, ref * jnp.float32(1.0 / (1.0 - P)), 0.0)
    assert jnp.allclose(out, ref_train, atol=1e-5, rtol=1e-5), "training-mode mismatch"

    # Eval-mode forward (dropout disabled).
    out_eval = image_embedding(x, label_token, position, dropout_rate=0.0)
    out_eval = jax.block_until_ready(out_eval)
    assert jnp.allclose(out_eval, ref, atol=1e-6), "eval-mode mismatch vs reference"

    print("KERNEL_OK")
</pallas_src>

<mosaic_0001>
module attributes {stable_mosaic.version = 11 : i64} {
  func.func @_embed_dropout_kernel(%arg0: i32, %arg1: memref<1x1x32xf32, #tpu.memory_space<vmem>>, %arg2: memref<1x9x32xf32, #tpu.memory_space<vmem>>, %arg3: memref<2x8x32xf32, #tpu.memory_space<vmem>>, %arg4: memref<2x9x32xf32, #tpu.memory_space<vmem>>, %arg5: memref<2x9x32xf32, #tpu.memory_space<vmem>>) attributes {dimension_semantics = [#tpu.dimension_semantics<parallel>], iteration_bounds = array<i64: 1>, scalar_prefetch = 0 : i64, scratch_operands = 0 : i64, tpu.core_type = #tpu.core_type<tc>, window_params = [{pipeline_mode = #tpu.pipeline_mode<synchronous>, transform_indices = @transform_0, window_bounds = array<i64: 1, 1, 32>}, {pipeline_mode = #tpu.pipeline_mode<synchronous>, transform_indices = @transform_1, window_bounds = array<i64: 1, 9, 32>}, {transform_indices = @transform_2, window_bounds = array<i64: 2, 8, 32>}, {transform_indices = @transform_3, window_bounds = array<i64: 2, 9, 32>}, {transform_indices = @transform_4, window_bounds = array<i64: 2, 9, 32>}]} {
    %c0 = arith.constant 0 : index
    %c0_0 = arith.constant 0 : index
    %c0_1 = arith.constant 0 : index
    %0 = vector.load %arg1[%c0, %c0_0, %c0_1] : memref<1x1x32xf32, #tpu.memory_space<vmem>>, vector<1x1x32xf32>
    %1 = vector.shape_cast %0 : vector<1x1x32xf32> to vector<1x32xf32>
    %c0_2 = arith.constant 0 : index
    %c0_3 = arith.constant 0 : index
    %c0_4 = arith.constant 0 : index
    %2 = vector.load %arg2[%c0_2, %c0_3, %c0_4] : memref<1x9x32xf32, #tpu.memory_space<vmem>>, vector<1x1x32xf32>
    %3 = vector.shape_cast %2 : vector<1x1x32xf32> to vector<1x32xf32>
    %4 = arith.addf %1, %3 : vector<1x32xf32>
    %5 = vector.shape_cast %4 : vector<1x32xf32> to vector<1x1x32xf32>
    %c0_5 = arith.constant 0 : index
    %c0_6 = arith.constant 0 : index
    %c0_7 = arith.constant 0 : index
    %6 = vector.load %arg4[%c0_5, %c0_6, %c0_7] : memref<2x9x32xf32, #tpu.memory_space<vmem>>, vector<2x1x32xf32>
    %7 = vector.broadcast %5 : vector<1x1x32xf32> to vector<2x1x32xf32>
    %8 = arith.mulf %7, %6 : vector<2x1x32xf32>
    %c0_8 = arith.constant 0 : index
    %c0_9 = arith.constant 0 : index
    %c0_10 = arith.constant 0 : index
    %9 = vector.load %arg5[%c0_8, %c0_9, %c0_10] : memref<2x9x32xf32, #tpu.memory_space<vmem>>, vector<2x1x32xf32>
    tpu.vector_store %arg5[%c0_8, %c0_9, %c0_10], %8 {strides = array<i32>} : memref<2x9x32xf32, #tpu.memory_space<vmem>>, vector<2x1x32xf32>,
    %c0_11 = arith.constant 0 : index
    %c0_12 = arith.constant 0 : index
    %c0_13 = arith.constant 0 : index
    %10 = vector.load %arg3[%c0_11, %c0_12, %c0_13] : memref<2x8x32xf32, #tpu.memory_space<vmem>>, vector<2x8x32xf32>
    %c0_14 = arith.constant 0 : index
    %c1 = arith.constant 1 : index
    %c0_15 = arith.constant 0 : index
    %11 = vector.load %arg2[%c0_14, %c1, %c0_15] : memref<1x9x32xf32, #tpu.memory_space<vmem>>, vector<1x8x32xf32>
    %12 = vector.shape_cast %11 : vector<1x8x32xf32> to vector<8x32xf32>
    %13 = vector.shape_cast %12 : vector<8x32xf32> to vector<1x8x32xf32>
    %14 = vector.broadcast %13 : vector<1x8x32xf32> to vector<2x8x32xf32>
    %15 = arith.addf %10, %14 : vector<2x8x32xf32>
    %c0_16 = arith.constant 0 : index
    %c1_17 = arith.constant 1 : index
    %c0_18 = arith.constant 0 : index
    %16 = vector.load %arg4[%c0_16, %c1_17, %c0_18] : memref<2x9x32xf32, #tpu.memory_space<vmem>>, vector<2x8x32xf32>
    %17 = arith.mulf %15, %16 : vector<2x8x32xf32>
    %c0_19 = arith.constant 0 : index
    %c1_20 = arith.constant 1 : index
    %c0_21 = arith.constant 0 : index
    %18 = vector.load %arg5[%c0_19, %c1_20, %c0_21] : memref<2x9x32xf32, #tpu.memory_space<vmem>>, vector<2x8x32xf32>
    tpu.vector_store %arg5[%c0_19, %c1_20, %c0_21], %17 {strides = array<i32>} : memref<2x9x32xf32, #tpu.memory_space<vmem>>, vector<2x8x32xf32>,
    return
  }
  func.func @transform_0(%arg0: i32) -> (i32, i32, i32) {
    %c0_i32 = arith.constant 0 : i32
    %c0_i32_0 = arith.constant 0 : i32
    %c0_i32_1 = arith.constant 0 : i32
    %c0_i32_2 = arith.constant 0 : i32
    return %c0_i32, %c0_i32_0, %c0_i32_1 : i32, i32, i32
  }
  func.func @transform_1(%arg0: i32) -> (i32, i32, i32) {
    %c0_i32 = arith.constant 0 : i32
    %c0_i32_0 = arith.constant 0 : i32
    %c0_i32_1 = arith.constant 0 : i32
    %c0_i32_2 = arith.constant 0 : i32
    return %c0_i32, %c0_i32_0, %c0_i32_1 : i32, i32, i32
  }
  func.func @transform_2(%arg0: i32) -> (i32, i32, i32) {
    %c0_i32 = arith.constant 0 : i32
    %c0_i32_0 = arith.constant 0 : i32
    %c0_i32_1 = arith.constant 0 : i32
    return %arg0, %c0_i32, %c0_i32_0 : i32, i32, i32
  }
  func.func @transform_3(%arg0: i32) -> (i32, i32, i32) {
    %c0_i32 = arith.constant 0 : i32
    %c0_i32_0 = arith.constant 0 : i32
    %c0_i32_1 = arith.constant 0 : i32
    return %arg0, %c0_i32, %c0_i32_0 : i32, i32, i32
  }
  func.func @transform_4(%arg0: i32) -> (i32, i32, i32) {
    %c0_i32 = arith.constant 0 : i32
    %c0_i32_0 = arith.constant 0 : i32
    %c0_i32_1 = arith.constant 0 : i32
    return %arg0, %c0_i32, %c0_i32_0 : i32, i32, i32
  }
}

</mosaic_0001>

<llo_original>
// kernel: tpu_custom_call.1
$region0: #{tpu_custom_call.1}
  #allocation0 [shape = 'u32[]', space=smem, size = 0x4, offset = 0x4, fixed_abs, tag = 'smem constant byte address 0x4 - core index']
  #allocation1 [shape = 'u32[72,128]{1,0:T(1,128)}', space=vmem, size = 0x9000, scoped, tag = 'internal scratch']
  %s0 = inlined_call_operand.vmem [shape: f32[1,1,32], index: 0, kind: input, shape index: {}]
  %s1 = inlined_call_operand.vmem [shape: f32[1,9,32], index: 1, kind: input, shape index: {}]
  %s2 = inlined_call_operand.vmem [shape: f32[2,8,32], index: 2, kind: input, shape index: {}]
  %s3 = inlined_call_operand.vmem [shape: f32[2,9,32], index: 3, kind: input, shape index: {}]
  %s4 = inlined_call_operand.vmem [shape: f32[2,9,32], index: 4, kind: output, shape index: {}]
  %s5 = sld [smem:[#allocation0]]
  $region26: #{tpu_custom_call.1} parent=0
    _
  %s7 = ssub.s32 1, %s5
  %s8 = scalar_select 0, %s7, %s5
  // Predicated region
  $region2: #{tpu_custom_call.1} parent=0 // pred_check
    _
  $region3: #{tpu_custom_call.1} parent=0 // pred_check_branch
    %10 = sbr.rel (0) target = $region5
  $region4: #{tpu_custom_call.1} parent=0 // pred_region
    _
  $region5: #{tpu_custom_call.1} parent=0 // pred_fallthru
    _
  // Predicated region
  $region6: #{tpu_custom_call.1} parent=0 // pred_check
    _
  $region7: #{tpu_custom_call.1} parent=0 // pred_check_branch
    %12 = sbr.rel (0) target = $region9
  $region8: #{tpu_custom_call.1} parent=0 // pred_region
    _
  $region9: #{tpu_custom_call.1} parent=0 // pred_fallthru
    _
  // Predicated region
  $region10: #{tpu_custom_call.1} parent=0 // pred_check
    _
  $region11: #{tpu_custom_call.1} parent=0 // pred_check_branch
    %14 = sbr.rel (0) target = $region13
  $region12: #{tpu_custom_call.1} parent=0 // pred_region
    _
  $region13: #{tpu_custom_call.1} parent=0 // pred_fallthru
    _
  // Predicated region
  $region14: #{tpu_custom_call.1} parent=0 // pred_check
    _
  $region15: #{tpu_custom_call.1} parent=0 // pred_check_branch
    %16 = sbr.rel (0) target = $region17
  $region16: #{tpu_custom_call.1} parent=0 // pred_region
    _
  $region17: #{tpu_custom_call.1} parent=0 // pred_fallthru
    _
  %v17 = vld [vmem:[%s0] sm:$0x1]
  %v18 = vld [vmem:[%s1] sm:$0x1]
  %v19 = vadd.f32 %v17, %v18
  %v20 = vld [vmem:[%s3] sm:$0x1]
  %v21 = vld [vmem:[%s3 + $0x10] sm:$0x1]
  %v22 = vmul.f32 %v19, %v20
  %v23 = vmul.f32 %v19, %v21
  %vm24 = vcmask 253952
  %25 = vst.msk [vmem:[%s4] sm:$0x1] %vm24, %v22
  %26 = vst.msk [vmem:[%s4 + $0x10] sm:$0x1] %vm24, %v23
  %v27 = vld [vmem:[%s2] sm:$0xff]
  %v28 = vld [vmem:[%s2 + $0x8] sm:$0xff]
  %v29 = vld [vmem:[%s1 + $0x1] sm:$0xff]
  %v30 = vadd.f32 %v27, %v29
  %v31 = vadd.f32 %v28, %v29
  %v32 = vld [vmem:[%s3 + $0x1] sm:$0xff]
  %v33 = vld [vmem:[%s3 + $0x11] sm:$0xff]
  %v34 = vmul.f32 %v30, %v32
  %v35 = vmul.f32 %v31, %v33
  %vm36 = vcmask 261120
  %37 = vst.msk [vmem:[%s4 + $0x1] sm:$0xff] %vm36, %v34
  %38 = vst.msk [vmem:[%s4 + $0x11] sm:$0xff] %vm36, %v35
  // Predicated region
  $region18: #{tpu_custom_call.1} parent=0 // pred_check
    _
  $region19: #{tpu_custom_call.1} parent=0 // pred_check_branch
    %40 = sbr.rel (0) target = $region21
  $region20: #{tpu_custom_call.1} parent=0 // pred_region
    _
  $region21: #{tpu_custom_call.1} parent=0 // pred_fallthru
    _
  // Predicated region
  $region22: #{tpu_custom_call.1} parent=0 // pred_check
    _
  $region23: #{tpu_custom_call.1} parent=0 // pred_check_branch
    %42 = sbr.rel (0) target = $region25
  $region24: #{tpu_custom_call.1} parent=0 // pred_region
    _
  $region25: #{tpu_custom_call.1} parent=0 // pred_fallthru
    _

</llo_original>
